<compile_context>
chip_gen: v6e
topology: v6e:2x2x1
jax: 0.10.0
libtpu: 0.0.40
codegen_flags: <defaults>
</compile_context>

<pallas_src>
import functools

import jax
import jax.numpy as jnp
from jax.experimental import pallas as pl
from jax.experimental.pallas import tpu as pltpu

N_HIDDEN = [32, 32, 32]


def _sigmoid(x):
    # sigmoid(x) == 0.5 * tanh(0.5 * x) + 0.5  (single EUP transcendental)
    return 0.5 * jnp.tanh(0.5 * x) + 0.5


def _nqs_kernel(x_ref, w0_ref, b0_ref, w1_ref, b1_ref, w2_ref, b2_ref,
                w3_ref, o_ref):
    """One batch tile of the MLP, feature-major (features x TB)."""
    h = x_ref[...]                                                    # (n_in, TB)
    h = _sigmoid(jnp.dot(w0_ref[...], h,
                         preferred_element_type=jnp.float32) + b0_ref[...])
    h = _sigmoid(jnp.dot(w1_ref[...], h,
                         preferred_element_type=jnp.float32) + b1_ref[...])
    h = _sigmoid(jnp.dot(w2_ref[...], h,
                         preferred_element_type=jnp.float32) + b2_ref[...])
    o_ref[...] = jnp.dot(w3_ref[...], h,
                         preferred_element_type=jnp.float32)          # (n_out, TB)


def prepare_params(weights, biases):
    """One-time parameter prep (hoisted out of the per-call path).

    weights: 4 arrays in PyTorch Linear layout (out_features, in_features)
    biases:  3 arrays of shape (n_hidden_i,)
    """
    w = tuple(jnp.asarray(wi, jnp.float32) for wi in weights)                 # (out, in)
    b = tuple(jnp.asarray(bi, jnp.float32).reshape(-1, 1) for bi in biases)   # (out, 1)
    return w, b


@functools.partial(jax.jit, static_argnames=("tb",))
def nqs_forward(x, params, *, tb=512):
    """Forward pass. x: (batch, n_in) -> (batch, n_out)."""
    w, b = params
    n_in = w[0].shape[1]
    n_out = w[-1].shape[0]
    batch = x.shape[0]

    # Lane axis = batch. Keep it a multiple of 128 so every store is unmasked.
    batch128 = pl.cdiv(batch, 128) * 128
    tile = min(max(128, (tb // 128) * 128), batch128)
    padded = pl.cdiv(batch128, tile) * tile
    grid = (padded // tile,)

    # Batch-on-lanes layout: (n_in, padded_batch).
    xt = jnp.asarray(x, jnp.float32).T
    if padded != batch:
        xt = jnp.pad(xt, ((0, 0), (0, padded - batch)))

    batch_map = lambda i: (0, i)          # walk the batch axis
    resident = lambda i: (0, 0)           # weights/biases stay put in VMEM

    in_specs = [pl.BlockSpec((n_in, tile), batch_map)]
    args = [xt]
    for wi, bi in zip(w[:-1], b):
        in_specs.append(pl.BlockSpec(wi.shape, resident))
        in_specs.append(pl.BlockSpec(bi.shape, resident))
        args.append(wi)
        args.append(bi)
    in_specs.append(pl.BlockSpec(w[-1].shape, resident))
    args.append(w[-1])

    out_t = pl.pallas_call(
        _nqs_kernel,
        out_shape=jax.ShapeDtypeStruct((n_out, padded), jnp.float32),
        grid=grid,
        in_specs=in_specs,
        out_specs=pl.BlockSpec((n_out, tile), batch_map),
        compiler_params=pltpu.CompilerParams(
            dimension_semantics=("parallel",)),
    )(*args)

    return out_t[:, :batch].T             # back to (batch, n_out)


def nqs_reference(x, weights, biases):
    """Plain-JAX reference mirroring the PyTorch forward."""
    h = jnp.asarray(x, jnp.float32)
    for i in range(3):
        h = jax.nn.sigmoid(h @ jnp.asarray(weights[i], jnp.float32).T
                           + jnp.asarray(biases[i], jnp.float32))
    return h @ jnp.asarray(weights[3], jnp.float32).T


if __name__ == "__main__":
    n_in, n_out = 4, 2

    key = jax.random.PRNGKey(0)
    keys = jax.random.split(key, 9)

    # Deterministic params mimicking torch.rand (uniform [0, 1)).
    layer_dims = list(zip(N_HIDDEN + [n_out], [n_in] + N_HIDDEN))  # (out, in)
    weights = [
        jax.random.uniform(keys[i], (o, i_), dtype=jnp.float32)
        for i, (o, i_) in enumerate(layer_dims)
    ]
    biases = [
        jax.random.uniform(keys[4 + i], (N_HIDDEN[i],), dtype=jnp.float32)
        for i in range(3)
    ]
    params = prepare_params(weights, biases)

    # Case 1: tiny batch (padded up to a single 128-wide block).
    x_small = jax.random.uniform(keys[7], (8, n_in), dtype=jnp.float32)
    out_small = jax.block_until_ready(nqs_forward(x_small, params))
    ref_small = nqs_reference(x_small, weights, biases)
    assert out_small.shape == (8, n_out)
    assert jnp.allclose(out_small, ref_small, atol=1e-5, rtol=1e-5), \
        "small-batch mismatch vs reference"

    # Case 2: batch larger than the tile (grid + padding path).
    x_big = jax.random.uniform(keys[8], (300, n_in), dtype=jnp.float32)
    out_big = jax.block_until_ready(nqs_forward(x_big, params, tb=128))
    ref_big = nqs_reference(x_big, weights, biases)
    assert out_big.shape == (300, n_out)
    assert jnp.allclose(out_big, ref_big, atol=1e-5, rtol=1e-5), \
        "tiled-batch mismatch vs reference"

    print("KERNEL_OK")
</pallas_src>

<mosaic_0001>
module attributes {stable_mosaic.version = 11 : i64} {
  func.func @_nqs_kernel(%arg0: i32, %arg1: memref<4x128xf32, #tpu.memory_space<vmem>>, %arg2: memref<32x4xf32, #tpu.memory_space<vmem>>, %arg3: memref<32x1xf32, #tpu.memory_space<vmem>>, %arg4: memref<32x32xf32, #tpu.memory_space<vmem>>, %arg5: memref<32x1xf32, #tpu.memory_space<vmem>>, %arg6: memref<32x32xf32, #tpu.memory_space<vmem>>, %arg7: memref<32x1xf32, #tpu.memory_space<vmem>>, %arg8: memref<2x32xf32, #tpu.memory_space<vmem>>, %arg9: memref<2x128xf32, #tpu.memory_space<vmem>>) attributes {dimension_semantics = [#tpu.dimension_semantics<parallel>], iteration_bounds = array<i64: 1>, scalar_prefetch = 0 : i64, scratch_operands = 0 : i64, tpu.core_type = #tpu.core_type<tc>, window_params = [{transform_indices = @transform_0, window_bounds = array<i64: 4, 128>}, {pipeline_mode = #tpu.pipeline_mode<synchronous>, transform_indices = @transform_1, window_bounds = array<i64: 32, 4>}, {pipeline_mode = #tpu.pipeline_mode<synchronous>, transform_indices = @transform_2, window_bounds = array<i64: 32, 1>}, {pipeline_mode = #tpu.pipeline_mode<synchronous>, transform_indices = @transform_3, window_bounds = array<i64: 32, 32>}, {pipeline_mode = #tpu.pipeline_mode<synchronous>, transform_indices = @transform_4, window_bounds = array<i64: 32, 1>}, {pipeline_mode = #tpu.pipeline_mode<synchronous>, transform_indices = @transform_5, window_bounds = array<i64: 32, 32>}, {pipeline_mode = #tpu.pipeline_mode<synchronous>, transform_indices = @transform_6, window_bounds = array<i64: 32, 1>}, {pipeline_mode = #tpu.pipeline_mode<synchronous>, transform_indices = @transform_7, window_bounds = array<i64: 2, 32>}, {transform_indices = @transform_8, window_bounds = array<i64: 2, 128>}]} {
    %c0 = arith.constant 0 : index
    %c0_0 = arith.constant 0 : index
    %0 = vector.load %arg1[%c0, %c0_0] : memref<4x128xf32, #tpu.memory_space<vmem>>, vector<4x128xf32>
    %c0_1 = arith.constant 0 : index
    %c0_2 = arith.constant 0 : index
    %1 = vector.load %arg2[%c0_1, %c0_2] : memref<32x4xf32, #tpu.memory_space<vmem>>, vector<32x4xf32>
    %cst = arith.constant dense<0.000000e+00> : vector<32x128xf32>
    %2 = tpu.matmul %1, %0, %cst {dimension_numbers = #tpu.dot_dimension_numbers<[1], [0], [0], [1], [0, 0, 1, 1], [], []>} : vector<32x4xf32>, vector<4x128xf32>, vector<32x128xf32> -> vector<32x128xf32>
    %c0_3 = arith.constant 0 : index
    %c0_4 = arith.constant 0 : index
    %3 = vector.load %arg3[%c0_3, %c0_4] : memref<32x1xf32, #tpu.memory_space<vmem>>, vector<32x1xf32>
    %4 = vector.broadcast %3 : vector<32x1xf32> to vector<32x128xf32>
    %5 = arith.addf %2, %4 : vector<32x128xf32>
    %cst_5 = arith.constant 5.000000e-01 : f32
    %6 = vector.broadcast %cst_5 : f32 to vector<32x128xf32>
    %7 = arith.mulf %6, %5 : vector<32x128xf32>
    %8 = math.tanh %7 : vector<32x128xf32>
    %cst_6 = arith.constant 5.000000e-01 : f32
    %9 = vector.broadcast %cst_6 : f32 to vector<32x128xf32>
    %10 = arith.mulf %9, %8 : vector<32x128xf32>
    %cst_7 = arith.constant 5.000000e-01 : f32
    %11 = vector.broadcast %cst_7 : f32 to vector<32x128xf32>
    %12 = arith.addf %10, %11 : vector<32x128xf32>
    %c0_8 = arith.constant 0 : index
    %c0_9 = arith.constant 0 : index
    %13 = vector.load %arg4[%c0_8, %c0_9] : memref<32x32xf32, #tpu.memory_space<vmem>>, vector<32x32xf32>
    %cst_10 = arith.constant dense<0.000000e+00> : vector<32x128xf32>
    %14 = tpu.matmul %13, %12, %cst_10 {dimension_numbers = #tpu.dot_dimension_numbers<[1], [0], [0], [1], [0, 0, 1, 1], [], []>} : vector<32x32xf32>, vector<32x128xf32>, vector<32x128xf32> -> vector<32x128xf32>
    %c0_11 = arith.constant 0 : index
    %c0_12 = arith.constant 0 : index
    %15 = vector.load %arg5[%c0_11, %c0_12] : memref<32x1xf32, #tpu.memory_space<vmem>>, vector<32x1xf32>
    %16 = vector.broadcast %15 : vector<32x1xf32> to vector<32x128xf32>
    %17 = arith.addf %14, %16 : vector<32x128xf32>
    %cst_13 = arith.constant 5.000000e-01 : f32
    %18 = vector.broadcast %cst_13 : f32 to vector<32x128xf32>
    %19 = arith.mulf %18, %17 : vector<32x128xf32>
    %20 = math.tanh %19 : vector<32x128xf32>
    %cst_14 = arith.constant 5.000000e-01 : f32
    %21 = vector.broadcast %cst_14 : f32 to vector<32x128xf32>
    %22 = arith.mulf %21, %20 : vector<32x128xf32>
    %cst_15 = arith.constant 5.000000e-01 : f32
    %23 = vector.broadcast %cst_15 : f32 to vector<32x128xf32>
    %24 = arith.addf %22, %23 : vector<32x128xf32>
    %c0_16 = arith.constant 0 : index
    %c0_17 = arith.constant 0 : index
    %25 = vector.load %arg6[%c0_16, %c0_17] : memref<32x32xf32, #tpu.memory_space<vmem>>, vector<32x32xf32>
    %cst_18 = arith.constant dense<0.000000e+00> : vector<32x128xf32>
    %26 = tpu.matmul %25, %24, %cst_18 {dimension_numbers = #tpu.dot_dimension_numbers<[1], [0], [0], [1], [0, 0, 1, 1], [], []>} : vector<32x32xf32>, vector<32x128xf32>, vector<32x128xf32> -> vector<32x128xf32>
    %c0_19 = arith.constant 0 : index
    %c0_20 = arith.constant 0 : index
    %27 = vector.load %arg7[%c0_19, %c0_20] : memref<32x1xf32, #tpu.memory_space<vmem>>, vector<32x1xf32>
    %28 = vector.broadcast %27 : vector<32x1xf32> to vector<32x128xf32>
    %29 = arith.addf %26, %28 : vector<32x128xf32>
    %cst_21 = arith.constant 5.000000e-01 : f32
    %30 = vector.broadcast %cst_21 : f32 to vector<32x128xf32>
    %31 = arith.mulf %30, %29 : vector<32x128xf32>
    %32 = math.tanh %31 : vector<32x128xf32>
    %cst_22 = arith.constant 5.000000e-01 : f32
    %33 = vector.broadcast %cst_22 : f32 to vector<32x128xf32>
    %34 = arith.mulf %33, %32 : vector<32x128xf32>
    %cst_23 = arith.constant 5.000000e-01 : f32
    %35 = vector.broadcast %cst_23 : f32 to vector<32x128xf32>
    %36 = arith.addf %34, %35 : vector<32x128xf32>
    %c0_24 = arith.constant 0 : index
    %c0_25 = arith.constant 0 : index
    %37 = vector.load %arg8[%c0_24, %c0_25] : memref<2x32xf32, #tpu.memory_space<vmem>>, vector<2x32xf32>
    %cst_26 = arith.constant dense<0.000000e+00> : vector<2x128xf32>
    %38 = tpu.matmul %37, %36, %cst_26 {dimension_numbers = #tpu.dot_dimension_numbers<[1], [0], [0], [1], [0, 0, 1, 1], [], []>} : vector<2x32xf32>, vector<32x128xf32>, vector<2x128xf32> -> vector<2x128xf32>
    %c0_27 = arith.constant 0 : index
    %c0_28 = arith.constant 0 : index
    %39 = vector.load %arg9[%c0_27, %c0_28] : memref<2x128xf32, #tpu.memory_space<vmem>>, vector<2x128xf32>
    tpu.vector_store %arg9[%c0_27, %c0_28], %38 {strides = array<i32>} : memref<2x128xf32, #tpu.memory_space<vmem>>, vector<2x128xf32>,
    return
  }
  func.func @transform_0(%arg0: i32) -> (i32, i32) {
    %c0_i32 = arith.constant 0 : i32
    %c0_i32_0 = arith.constant 0 : i32
    return %c0_i32, %arg0 : i32, i32
  }
  func.func @transform_1(%arg0: i32) -> (i32, i32) {
    %c0_i32 = arith.constant 0 : i32
    %c0_i32_0 = arith.constant 0 : i32
    %c0_i32_1 = arith.constant 0 : i32
    return %c0_i32, %c0_i32_0 : i32, i32
  }
  func.func @transform_2(%arg0: i32) -> (i32, i32) {
    %c0_i32 = arith.constant 0 : i32
    %c0_i32_0 = arith.constant 0 : i32
    %c0_i32_1 = arith.constant 0 : i32
    return %c0_i32, %c0_i32_0 : i32, i32
  }
  func.func @transform_3(%arg0: i32) -> (i32, i32) {
    %c0_i32 = arith.constant 0 : i32
    %c0_i32_0 = arith.constant 0 : i32
    %c0_i32_1 = arith.constant 0 : i32
    return %c0_i32, %c0_i32_0 : i32, i32
  }
  func.func @transform_4(%arg0: i32) -> (i32, i32) {
    %c0_i32 = arith.constant 0 : i32
    %c0_i32_0 = arith.constant 0 : i32
    %c0_i32_1 = arith.constant 0 : i32
    return %c0_i32, %c0_i32_0 : i32, i32
  }
  func.func @transform_5(%arg0: i32) -> (i32, i32) {
    %c0_i32 = arith.constant 0 : i32
    %c0_i32_0 = arith.constant 0 : i32
    %c0_i32_1 = arith.constant 0 : i32
    return %c0_i32, %c0_i32_0 : i32, i32
  }
  func.func @transform_6(%arg0: i32) -> (i32, i32) {
    %c0_i32 = arith.constant 0 : i32
    %c0_i32_0 = arith.constant 0 : i32
    %c0_i32_1 = arith.constant 0 : i32
    return %c0_i32, %c0_i32_0 : i32, i32
  }
  func.func @transform_7(%arg0: i32) -> (i32, i32) {
    %c0_i32 = arith.constant 0 : i32
    %c0_i32_0 = arith.constant 0 : i32
    %c0_i32_1 = arith.constant 0 : i32
    return %c0_i32, %c0_i32_0 : i32, i32
  }
  func.func @transform_8(%arg0: i32) -> (i32, i32) {
    %c0_i32 = arith.constant 0 : i32
    %c0_i32_0 = arith.constant 0 : i32
    return %c0_i32, %arg0 : i32, i32
  }
}

</mosaic_0001>

<llo_original>
// kernel: nqs_forward.1
$region0: #{nqs_forward.1}
  #allocation0 [shape = 'u32[]', space=smem, size = 0x4, offset = 0x4, fixed_abs, tag = 'smem constant byte address 0x4 - core index']
  #allocation1 [shape = 'u32[144,128]{1,0:T(1,128)}', space=vmem, size = 0x12000, scoped, tag = 'internal scratch']
  %s0 = inlined_call_operand.vmem [shape: f32[4,128], index: 0, kind: input, shape index: {}]
  %s1 = inlined_call_operand.vmem [shape: f32[32,4], index: 1, kind: input, shape index: {}]
  %s2 = inlined_call_operand.vmem [shape: f32[32,1], index: 2, kind: input, shape index: {}]
  %s3 = inlined_call_operand.vmem [shape: f32[32,32], index: 3, kind: input, shape index: {}]
  %s4 = inlined_call_operand.vmem [shape: f32[32,1], index: 4, kind: input, shape index: {}]
  %s5 = inlined_call_operand.vmem [shape: f32[32,32], index: 5, kind: input, shape index: {}]
  %s6 = inlined_call_operand.vmem [shape: f32[32,1], index: 6, kind: input, shape index: {}]
  %s7 = inlined_call_operand.vmem [shape: f32[2,32], index: 7, kind: input, shape index: {}]
  %s8 = inlined_call_operand.vmem [shape: f32[2,128], index: 8, kind: output, shape index: {}]
  %s9 = sld [smem:[#allocation0]]
  $region42: #{nqs_forward.1} parent=0
    _
  %s11 = ssub.s32 1, %s9
  %s12 = scalar_select 0, %s11, %s9
  // Predicated region
  $region2: #{nqs_forward.1} parent=0 // pred_check
    _
  $region3: #{nqs_forward.1} parent=0 // pred_check_branch
    %14 = sbr.rel (0) target = $region5
  $region4: #{nqs_forward.1} parent=0 // pred_region
    _
  $region5: #{nqs_forward.1} parent=0 // pred_fallthru
    _
  // Predicated region
  $region6: #{nqs_forward.1} parent=0 // pred_check
    _
  $region7: #{nqs_forward.1} parent=0 // pred_check_branch
    %16 = sbr.rel (0) target = $region9
  $region8: #{nqs_forward.1} parent=0 // pred_region
    _
  $region9: #{nqs_forward.1} parent=0 // pred_fallthru
    _
  // Predicated region
  $region10: #{nqs_forward.1} parent=0 // pred_check
    _
  $region11: #{nqs_forward.1} parent=0 // pred_check_branch
    %18 = sbr.rel (0) target = $region13
  $region12: #{nqs_forward.1} parent=0 // pred_region
    _
  $region13: #{nqs_forward.1} parent=0 // pred_fallthru
    _
  // Predicated region
  $region14: #{nqs_forward.1} parent=0 // pred_check
    _
  $region15: #{nqs_forward.1} parent=0 // pred_check_branch
    %20 = sbr.rel (0) target = $region17
  $region16: #{nqs_forward.1} parent=0 // pred_region
    _
  $region17: #{nqs_forward.1} parent=0 // pred_fallthru
    _
  // Predicated region
  $region18: #{nqs_forward.1} parent=0 // pred_check
    _
  $region19: #{nqs_forward.1} parent=0 // pred_check_branch
    %22 = sbr.rel (0) target = $region21
  $region20: #{nqs_forward.1} parent=0 // pred_region
    _
  $region21: #{nqs_forward.1} parent=0 // pred_fallthru
    _
  // Predicated region
  $region22: #{nqs_forward.1} parent=0 // pred_check
    _
  $region23: #{nqs_forward.1} parent=0 // pred_check_branch
    %24 = sbr.rel (0) target = $region25
  $region24: #{nqs_forward.1} parent=0 // pred_region
    _
  $region25: #{nqs_forward.1} parent=0 // pred_fallthru
    _
  // Predicated region
  $region26: #{nqs_forward.1} parent=0 // pred_check
    _
  $region27: #{nqs_forward.1} parent=0 // pred_check_branch
    %26 = sbr.rel (0) target = $region29
  $region28: #{nqs_forward.1} parent=0 // pred_region
    _
  $region29: #{nqs_forward.1} parent=0 // pred_fallthru
    _
  // Predicated region
  $region30: #{nqs_forward.1} parent=0 // pred_check
    _
  $region31: #{nqs_forward.1} parent=0 // pred_check_branch
    %28 = sbr.rel (0) target = $region33
  $region32: #{nqs_forward.1} parent=0 // pred_region
    _
  $region33: #{nqs_forward.1} parent=0 // pred_fallthru
    _
  %v29 = vld [vmem:[%s0] sm:$0xf]
  %v30 = vld [vmem:[%s1] sm:$0xff]
  %v31 = vld [vmem:[%s1 + $0x8] sm:$0xff]
  %v32 = vld [vmem:[%s1 + $0x10] sm:$0xff]
  %v33 = vld [vmem:[%s1 + $0x18] sm:$0xff]
  %v34 = vld [vmem:[%s2] sm:$0xff]
  %v35 = vld [vmem:[%s2 + $0x8] sm:$0xff]
  %v36 = vld [vmem:[%s2 + $0x10] sm:$0xff]
  %v37 = vld [vmem:[%s2 + $0x18] sm:$0xff]
  %39 = vset.pattern.permute.xlu0 0
  %40 = vperm.xlu0 %39, %v34
  %v41 = vpop.permute.xlu0 %40
  %44 = vset.pattern.permute.xlu0 0
  %45 = vperm.xlu0 %44, %v35
  %v46 = vpop.permute.xlu0 %45
  %49 = vset.pattern.permute.xlu0 0
  %50 = vperm.xlu0 %49, %v36
  %v51 = vpop.permute.xlu0 %50
  %54 = vset.pattern.permute.xlu0 0
  %55 = vperm.xlu0 %54, %v37
  %v56 = vpop.permute.xlu0 %55
  %vm58 = vcmask 31744
  %v60 = vsel %vm58, %v30, 0
  %v63 = vsel %vm58, %v31, 0
  %v66 = vsel %vm58, %v32, 0
  %v69 = vsel %vm58, %v33, 0
  %vm71 = vcmask 1043456
  %v73 = vsel %vm71, %v29, 0
  %75 = vmatprep.subr.mxu0 0.0
  %76 = vmatpush1.msra.mxu0 0.0
  %77 = vmatprep.subr.mxu0 0.0
  %78 = vmatpush1.msra.mxu0 0.0
  %79 = vmatprep.subr.mxu0 0.0
  %80 = vmatpush1.msra.mxu0 0.0
  %81 = vmatprep.subr.mxu0 0.0
  %82 = vmatpush1.msra.mxu0 0.0
  %83 = vmatprep.subr.mxu0 0.0
  %84 = vmatpush1.msra.mxu0 0.0
  %85 = vmatprep.subr.mxu0 0.0
  %86 = vmatpush1.msra.mxu0 0.0
  %87 = vmatprep.subr.mxu0 0.0
  %88 = vmatpush1.msra.mxu0 0.0
  %89 = vmatprep.subr.mxu0 0.0
  %90 = vmatpush1.msra.mxu0 0.0
  %91 = vmatprep.subr.mxu0 0.0
  %92 = vmatpush1.msra.mxu0 0.0
  %93 = vmatprep.subr.mxu0 0.0
  %94 = vmatpush1.msra.mxu0 0.0
  %95 = vmatprep.subr.mxu0 0.0
  %96 = vmatpush1.msra.mxu0 0.0
  %97 = vmatprep.subr.mxu0 0.0
  %98 = vmatpush1.msra.mxu0 0.0
  %99 = vmatprep.subr.mxu0 0.0
  %100 = vmatpush1.msra.mxu0 0.0
  %101 = vmatprep.subr.mxu0 0.0
  %102 = vmatpush1.msra.mxu0 0.0
  %103 = vmatprep.subr.mxu0 0.0
  %104 = vmatpush1.msra.mxu0 0.0
  %105 = vmatprep.subr.mxu0 0.0
  %106 = vmatpush1.msra.mxu0 %v73
  %107 = vmatprep.subr.mxu0 0.0
  %108 = vmatpush2.msra.mxu0 0.0
  %109 = vmatprep.subr.mxu0 0.0
  %110 = vmatpush2.msra.mxu0 0.0
  %111 = vmatprep.subr.mxu0 0.0
  %112 = vmatpush2.msra.mxu0 0.0
  %113 = vmatprep.subr.mxu0 0.0
  %114 = vmatpush2.msra.mxu0 0.0
  %115 = vmatprep.subr.mxu0 0.0
  %116 = vmatpush2.msra.mxu0 0.0
  %117 = vmatprep.subr.mxu0 0.0
  %118 = vmatpush2.msra.mxu0 0.0
  %119 = vmatprep.subr.mxu0 0.0
  %120 = vmatpush2.msra.mxu0 0.0
  %121 = vmatprep.subr.mxu0 0.0
  %122 = vmatpush2.msra.mxu0 0.0
  %123 = vmatprep.subr.mxu0 0.0
  %124 = vmatpush2.msra.mxu0 0.0
  %125 = vmatprep.subr.mxu0 0.0
  %126 = vmatpush2.msra.mxu0 0.0
  %127 = vmatprep.subr.mxu0 0.0
  %128 = vmatpush2.msra.mxu0 0.0
  %129 = vmatprep.subr.mxu0 0.0
  %130 = vmatpush2.msra.mxu0 0.0
  %131 = vmatprep.subr.mxu0 0.0
  %132 = vmatpush2.msra.mxu0 0.0
  %133 = vmatprep.subr.mxu0 0.0
  %134 = vmatpush2.msra.mxu0 0.0
  %135 = vmatprep.subr.mxu0 0.0
  %136 = vmatpush2.msra.mxu0 0.0
  %137 = vmatprep.subr.mxu0 0.0
  %138 = vmatpush2.msra.mxu0 0.0
  %139 = vmatprep.mubr.f32.mxu0 0.0
  %140 = vmatmul.mubr.f32.gmra.mxu0 %v60
  %v141 = vpop.f32.mrf.mxu0
  %v142 = vadd.f32 %v41, %v141
  %v143 = vpop.f32.mrf.mxu0
  %144 = vmatprep.mubr.f32.mxu0 0.0
  %145 = vmatmul.mubr.f32.gmra.mxu0 %v63
  %v146 = vpop.f32.mrf.mxu0
  %v147 = vadd.f32 %v46, %v146
  %v148 = vpop.f32.mrf.mxu0
  %149 = vmatprep.mubr.f32.mxu0 0.0
  %150 = vmatmul.mubr.f32.gmra.mxu0 %v66
  %v151 = vpop.f32.mrf.mxu0
  %v152 = vadd.f32 %v51, %v151
  %v153 = vpop.f32.mrf.mxu0
  %154 = vmatprep.mubr.f32.mxu0 0.0
  %155 = vmatmul.mubr.f32.gmra.mxu0 %v69
  %v156 = vpop.f32.mrf.mxu0
  %v157 = vadd.f32 %v56, %v156
  %v158 = vpop.f32.mrf.mxu0
  %159 = vdwg.mxu0
  %v160 = vmul.f32 %v142, 0.5
  %v161 = vmul.f32 %v147, 0.5
  %v162 = vmul.f32 %v152, 0.5
  %v163 = vmul.f32 %v157, 0.5
  %v164 = vtanh.pop %v160
  %v165 = vtanh.pop %v161
  %v166 = vtanh.pop %v162
  %v167 = vtanh.pop %v163
  %v168 = vmul.f32 %v164, 0.5
  %v169 = vmul.f32 %v165, 0.5
  %v170 = vmul.f32 %v166, 0.5
  %v171 = vmul.f32 %v167, 0.5
  %v172 = vadd.f32 %v168, 0.5
  %v173 = vadd.f32 %v169, 0.5
  %v174 = vadd.f32 %v170, 0.5
  %v175 = vadd.f32 %v171, 0.5
  %v176 = vld [vmem:[%s3] sm:$0xff]
  %v177 = vld [vmem:[%s3 + $0x8] sm:$0xff]
  %v178 = vld [vmem:[%s3 + $0x10] sm:$0xff]
  %v179 = vld [vmem:[%s3 + $0x18] sm:$0xff]
  %v180 = vld [vmem:[%s4] sm:$0xff]
  %v181 = vld [vmem:[%s4 + $0x8] sm:$0xff]
  %v182 = vld [vmem:[%s4 + $0x10] sm:$0xff]
  %v183 = vld [vmem:[%s4 + $0x18] sm:$0xff]
  %185 = vset.pattern.permute.xlu0 0
  %186 = vperm.xlu0 %185, %v180
  %v187 = vpop.permute.xlu0 %186
  %190 = vset.pattern.permute.xlu0 0
  %191 = vperm.xlu0 %190, %v181
  %v192 = vpop.permute.xlu0 %191
  %195 = vset.pattern.permute.xlu0 0
  %196 = vperm.xlu0 %195, %v182
  %v197 = vpop.permute.xlu0 %196
  %200 = vset.pattern.permute.xlu0 0
  %201 = vperm.xlu0 %200, %v183
  %v202 = vpop.permute.xlu0 %201
  %vm204 = vcmask 261120
  %v206 = vsel %vm204, %v176, 0
  %v209 = vsel %vm204, %v177, 0
  %v212 = vsel %vm204, %v178, 0
  %v215 = vsel %vm204, %v179, 0
  %217 = vmatprep.subr.mxu0 0.0
  %218 = vmatpush1.msra.mxu0 0.0
  %219 = vmatprep.subr.mxu0 0.0
  %220 = vmatpush1.msra.mxu0 0.0
  %221 = vmatprep.subr.mxu0 0.0
  %222 = vmatpush1.msra.mxu0 0.0
  %223 = vmatprep.subr.mxu0 0.0
  %224 = vmatpush1.msra.mxu0 0.0
  %225 = vmatprep.subr.mxu0 0.0
  %226 = vmatpush1.msra.mxu0 0.0
  %227 = vmatprep.subr.mxu0 0.0
  %228 = vmatpush1.msra.mxu0 0.0
  %229 = vmatprep.subr.mxu0 0.0
  %230 = vmatpush1.msra.mxu0 0.0
  %231 = vmatprep.subr.mxu0 0.0
  %232 = vmatpush1.msra.mxu0 0.0
  %233 = vmatprep.subr.mxu0 0.0
  %234 = vmatpush1.msra.mxu0 0.0
  %235 = vmatprep.subr.mxu0 0.0
  %236 = vmatpush1.msra.mxu0 0.0
  %237 = vmatprep.subr.mxu0 0.0
  %238 = vmatpush1.msra.mxu0 0.0
  %239 = vmatprep.subr.mxu0 0.0
  %240 = vmatpush1.msra.mxu0 0.0
  %241 = vmatprep.subr.mxu0 0.0
  %242 = vmatpush1.msra.mxu0 %v175
  %243 = vmatprep.subr.mxu0 0.0
  %244 = vmatpush1.msra.mxu0 %v174
  %245 = vmatprep.subr.mxu0 0.0
  %246 = vmatpush1.msra.mxu0 %v173
  %247 = vmatprep.subr.mxu0 0.0
  %248 = vmatpush1.msra.mxu0 %v172
  %249 = vmatprep.subr.mxu0 0.0
  %250 = vmatpush2.msra.mxu0 0.0
  %251 = vmatprep.subr.mxu0 0.0
  %252 = vmatpush2.msra.mxu0 0.0
  %253 = vmatprep.subr.mxu0 0.0
  %254 = vmatpush2.msra.mxu0 0.0
  %255 = vmatprep.subr.mxu0 0.0
  %256 = vmatpush2.msra.mxu0 0.0
  %257 = vmatprep.subr.mxu0 0.0
  %258 = vmatpush2.msra.mxu0 0.0
  %259 = vmatprep.subr.mxu0 0.0
  %260 = vmatpush2.msra.mxu0 0.0
  %261 = vmatprep.subr.mxu0 0.0
  %262 = vmatpush2.msra.mxu0 0.0
  %263 = vmatprep.subr.mxu0 0.0
  %264 = vmatpush2.msra.mxu0 0.0
  %265 = vmatprep.subr.mxu0 0.0
  %266 = vmatpush2.msra.mxu0 0.0
  %267 = vmatprep.subr.mxu0 0.0
  %268 = vmatpush2.msra.mxu0 0.0
  %269 = vmatprep.subr.mxu0 0.0
  %270 = vmatpush2.msra.mxu0 0.0
  %271 = vmatprep.subr.mxu0 0.0
  %272 = vmatpush2.msra.mxu0 0.0
  %273 = vmatprep.subr.mxu0 0.0
  %274 = vmatpush2.msra.mxu0 0.0
  %275 = vmatprep.subr.mxu0 0.0
  %276 = vmatpush2.msra.mxu0 0.0
  %277 = vmatprep.subr.mxu0 0.0
  %278 = vmatpush2.msra.mxu0 0.0
  %279 = vmatprep.subr.mxu0 0.0
  %280 = vmatpush2.msra.mxu0 0.0
  %281 = vmatprep.mubr.f32.mxu0 0.0
  %282 = vmatmul.mubr.f32.gmra.mxu0 %v206
  %v283 = vpop.f32.mrf.mxu0
  %v284 = vadd.f32 %v187, %v283
  %v285 = vpop.f32.mrf.mxu0
  %286 = vmatprep.mubr.f32.mxu0 0.0
  %287 = vmatmul.mubr.f32.gmra.mxu0 %v209
  %v288 = vpop.f32.mrf.mxu0
  %v289 = vadd.f32 %v192, %v288
  %v290 = vpop.f32.mrf.mxu0
  %291 = vmatprep.mubr.f32.mxu0 0.0
  %292 = vmatmul.mubr.f32.gmra.mxu0 %v212
  %v293 = vpop.f32.mrf.mxu0
  %v294 = vadd.f32 %v197, %v293
  %v295 = vpop.f32.mrf.mxu0
  %296 = vmatprep.mubr.f32.mxu0 0.0
  %297 = vmatmul.mubr.f32.gmra.mxu0 %v215
  %v298 = vpop.f32.mrf.mxu0
  %v299 = vadd.f32 %v202, %v298
  %v300 = vpop.f32.mrf.mxu0
  %301 = vdwg.mxu0
  %v302 = vmul.f32 %v284, 0.5
  %v303 = vmul.f32 %v289, 0.5
  %v304 = vmul.f32 %v294, 0.5
  %v305 = vmul.f32 %v299, 0.5
  %v306 = vtanh.pop %v302
  %v307 = vtanh.pop %v303
  %v308 = vtanh.pop %v304
  %v309 = vtanh.pop %v305
  %v310 = vmul.f32 %v306, 0.5
  %v311 = vmul.f32 %v307, 0.5
  %v312 = vmul.f32 %v308, 0.5
  %v313 = vmul.f32 %v309, 0.5
  %v314 = vadd.f32 %v310, 0.5
  %v315 = vadd.f32 %v311, 0.5
  %v316 = vadd.f32 %v312, 0.5
  %v317 = vadd.f32 %v313, 0.5
  %v318 = vld [vmem:[%s5] sm:$0xff]
  %v319 = vld [vmem:[%s5 + $0x8] sm:$0xff]
  %v320 = vld [vmem:[%s5 + $0x10] sm:$0xff]
  %v321 = vld [vmem:[%s5 + $0x18] sm:$0xff]
  %v322 = vld [vmem:[%s6] sm:$0xff]
  %v323 = vld [vmem:[%s6 + $0x8] sm:$0xff]
  %v324 = vld [vmem:[%s6 + $0x10] sm:$0xff]
  %v325 = vld [vmem:[%s6 + $0x18] sm:$0xff]
  %327 = vset.pattern.permute.xlu0 0
  %328 = vperm.xlu0 %327, %v322
  %v329 = vpop.permute.xlu0 %328
  %332 = vset.pattern.permute.xlu0 0
  %333 = vperm.xlu0 %332, %v323
  %v334 = vpop.permute.xlu0 %333
  %337 = vset.pattern.permute.xlu0 0
  %338 = vperm.xlu0 %337, %v324
  %v339 = vpop.permute.xlu0 %338
  %342 = vset.pattern.permute.xlu0 0
  %343 = vperm.xlu0 %342, %v325
  %v344 = vpop.permute.xlu0 %343
  %v347 = vsel %vm204, %v318, 0
  %v350 = vsel %vm204, %v319, 0
  %v353 = vsel %vm204, %v320, 0
  %v356 = vsel %vm204, %v321, 0
  %358 = vmatprep.subr.mxu0 0.0
  %359 = vmatpush1.msra.mxu0 0.0
  %360 = vmatprep.subr.mxu0 0.0
  %361 = vmatpush1.msra.mxu0 0.0
  %362 = vmatprep.subr.mxu0 0.0
  %363 = vmatpush1.msra.mxu0 0.0
  %364 = vmatprep.subr.mxu0 0.0
  %365 = vmatpush1.msra.mxu0 0.0
  %366 = vmatprep.subr.mxu0 0.0
  %367 = vmatpush1.msra.mxu0 0.0
  %368 = vmatprep.subr.mxu0 0.0
  %369 = vmatpush1.msra.mxu0 0.0
  %370 = vmatprep.subr.mxu0 0.0
  %371 = vmatpush1.msra.mxu0 0.0
  %372 = vmatprep.subr.mxu0 0.0
  %373 = vmatpush1.msra.mxu0 0.0
  %374 = vmatprep.subr.mxu0 0.0
  %375 = vmatpush1.msra.mxu0 0.0
  %376 = vmatprep.subr.mxu0 0.0
  %377 = vmatpush1.msra.mxu0 0.0
  %378 = vmatprep.subr.mxu0 0.0
  %379 = vmatpush1.msra.mxu0 0.0
  %380 = vmatprep.subr.mxu0 0.0
  %381 = vmatpush1.msra.mxu0 0.0
  %382 = vmatprep.subr.mxu0 0.0
  %383 = vmatpush1.msra.mxu0 %v317
  %384 = vmatprep.subr.mxu0 0.0
  %385 = vmatpush1.msra.mxu0 %v316
  %386 = vmatprep.subr.mxu0 0.0
  %387 = vmatpush1.msra.mxu0 %v315
  %388 = vmatprep.subr.mxu0 0.0
  %389 = vmatpush1.msra.mxu0 %v314
  %390 = vmatprep.subr.mxu0 0.0
  %391 = vmatpush2.msra.mxu0 0.0
  %392 = vmatprep.subr.mxu0 0.0
  %393 = vmatpush2.msra.mxu0 0.0
  %394 = vmatprep.subr.mxu0 0.0
  %395 = vmatpush2.msra.mxu0 0.0
  %396 = vmatprep.subr.mxu0 0.0
  %397 = vmatpush2.msra.mxu0 0.0
  %398 = vmatprep.subr.mxu0 0.0
  %399 = vmatpush2.msra.mxu0 0.0
  %400 = vmatprep.subr.mxu0 0.0
  %401 = vmatpush2.msra.mxu0 0.0
  %402 = vmatprep.subr.mxu0 0.0
  %403 = vmatpush2.msra.mxu0 0.0
  %404 = vmatprep.subr.mxu0 0.0
  %405 = vmatpush2.msra.mxu0 0.0
  %406 = vmatprep.subr.mxu0 0.0
  %407 = vmatpush2.msra.mxu0 0.0
  %408 = vmatprep.subr.mxu0 0.0
  %409 = vmatpush2.msra.mxu0 0.0
  %410 = vmatprep.subr.mxu0 0.0
  %411 = vmatpush2.msra.mxu0 0.0
  %412 = vmatprep.subr.mxu0 0.0
  %413 = vmatpush2.msra.mxu0 0.0
  %414 = vmatprep.subr.mxu0 0.0
  %415 = vmatpush2.msra.mxu0 0.0
  %416 = vmatprep.subr.mxu0 0.0
  %417 = vmatpush2.msra.mxu0 0.0
  %418 = vmatprep.subr.mxu0 0.0
  %419 = vmatpush2.msra.mxu0 0.0
  %420 = vmatprep.subr.mxu0 0.0
  %421 = vmatpush2.msra.mxu0 0.0
  %422 = vmatprep.mubr.f32.mxu0 0.0
  %423 = vmatmul.mubr.f32.gmra.mxu0 %v347
  %v424 = vpop.f32.mrf.mxu0
  %v425 = vadd.f32 %v329, %v424
  %v426 = vpop.f32.mrf.mxu0
  %427 = vmatprep.mubr.f32.mxu0 0.0
  %428 = vmatmul.mubr.f32.gmra.mxu0 %v350
  %v429 = vpop.f32.mrf.mxu0
  %v430 = vadd.f32 %v334, %v429
  %v431 = vpop.f32.mrf.mxu0
  %432 = vmatprep.mubr.f32.mxu0 0.0
  %433 = vmatmul.mubr.f32.gmra.mxu0 %v353
  %v434 = vpop.f32.mrf.mxu0
  %v435 = vadd.f32 %v339, %v434
  %v436 = vpop.f32.mrf.mxu0
  %437 = vmatprep.mubr.f32.mxu0 0.0
  %438 = vmatmul.mubr.f32.gmra.mxu0 %v356
  %v439 = vpop.f32.mrf.mxu0
  %v440 = vadd.f32 %v344, %v439
  %v441 = vpop.f32.mrf.mxu0
  %442 = vdwg.mxu0
  %v443 = vmul.f32 %v425, 0.5
  %v444 = vmul.f32 %v430, 0.5
  %v445 = vmul.f32 %v435, 0.5
  %v446 = vmul.f32 %v440, 0.5
  %v447 = vtanh.pop %v443
  %v448 = vtanh.pop %v444
  %v449 = vtanh.pop %v445
  %v450 = vtanh.pop %v446
  %v451 = vmul.f32 %v447, 0.5
  %v452 = vmul.f32 %v448, 0.5
  %v453 = vmul.f32 %v449, 0.5
  %v454 = vmul.f32 %v450, 0.5
  %v455 = vadd.f32 %v451, 0.5
  %v456 = vadd.f32 %v452, 0.5
  %v457 = vadd.f32 %v453, 0.5
  %v458 = vadd.f32 %v454, 0.5
  %v459 = vld [vmem:[%s7] sm:$0x3]
  %v461 = vsel %vm204, %v459, 0
  %463 = vmatprep.subr.mxu0 0.0
  %464 = vmatpush1.msra.mxu0 0.0
  %465 = vmatprep.subr.mxu0 0.0
  %466 = vmatpush1.msra.mxu0 0.0
  %467 = vmatprep.subr.mxu0 0.0
  %468 = vmatpush1.msra.mxu0 0.0
  %469 = vmatprep.subr.mxu0 0.0
  %470 = vmatpush1.msra.mxu0 0.0
  %471 = vmatprep.subr.mxu0 0.0
  %472 = vmatpush1.msra.mxu0 0.0
  %473 = vmatprep.subr.mxu0 0.0
  %474 = vmatpush1.msra.mxu0 0.0
  %475 = vmatprep.subr.mxu0 0.0
  %476 = vmatpush1.msra.mxu0 0.0
  %477 = vmatprep.subr.mxu0 0.0
  %478 = vmatpush1.msra.mxu0 0.0
  %479 = vmatprep.subr.mxu0 0.0
  %480 = vmatpush1.msra.mxu0 0.0
  %481 = vmatprep.subr.mxu0 0.0
  %482 = vmatpush1.msra.mxu0 0.0
  %483 = vmatprep.subr.mxu0 0.0
  %484 = vmatpush1.msra.mxu0 0.0
  %485 = vmatprep.subr.mxu0 0.0
  %486 = vmatpush1.msra.mxu0 0.0
  %487 = vmatprep.subr.mxu0 0.0
  %488 = vmatpush1.msra.mxu0 %v458
  %489 = vmatprep.subr.mxu0 0.0
  %490 = vmatpush1.msra.mxu0 %v457
  %491 = vmatprep.subr.mxu0 0.0
  %492 = vmatpush1.msra.mxu0 %v456
  %493 = vmatprep.subr.mxu0 0.0
  %494 = vmatpush1.msra.mxu0 %v455
  %495 = vmatprep.subr.mxu0 0.0
  %496 = vmatpush2.msra.mxu0 0.0
  %497 = vmatprep.subr.mxu0 0.0
  %498 = vmatpush2.msra.mxu0 0.0
  %499 = vmatprep.subr.mxu0 0.0
  %500 = vmatpush2.msra.mxu0 0.0
  %501 = vmatprep.subr.mxu0 0.0
  %502 = vmatpush2.msra.mxu0 0.0
  %503 = vmatprep.subr.mxu0 0.0
  %504 = vmatpush2.msra.mxu0 0.0
  %505 = vmatprep.subr.mxu0 0.0
  %506 = vmatpush2.msra.mxu0 0.0
  %507 = vmatprep.subr.mxu0 0.0
  %508 = vmatpush2.msra.mxu0 0.0
  %509 = vmatprep.subr.mxu0 0.0
  %510 = vmatpush2.msra.mxu0 0.0
  %511 = vmatprep.subr.mxu0 0.0
  %512 = vmatpush2.msra.mxu0 0.0
  %513 = vmatprep.subr.mxu0 0.0
  %514 = vmatpush2.msra.mxu0 0.0
  %515 = vmatprep.subr.mxu0 0.0
  %516 = vmatpush2.msra.mxu0 0.0
  %517 = vmatprep.subr.mxu0 0.0
  %518 = vmatpush2.msra.mxu0 0.0
  %519 = vmatprep.subr.mxu0 0.0
  %520 = vmatpush2.msra.mxu0 0.0
  %521 = vmatprep.subr.mxu0 0.0
  %522 = vmatpush2.msra.mxu0 0.0
  %523 = vmatprep.subr.mxu0 0.0
  %524 = vmatpush2.msra.mxu0 0.0
  %525 = vmatprep.subr.mxu0 0.0
  %526 = vmatpush2.msra.mxu0 0.0
  %527 = vmatprep.mubr.f32.mxu0 0.0
  %528 = vmatmul.mubr.f32.gmra.mxu0 %v461
  %v529 = vpop.f32.mrf.mxu0
  %v530 = vadd.f32 0.0, %v529
  %v531 = vpop.f32.mrf.mxu0
  %532 = vdwg.mxu0
  %533 = vst [vmem:[%s8] sm:$0x3] %v530
  // Predicated region
  $region34: #{nqs_forward.1} parent=0 // pred_check
    _
  $region35: #{nqs_forward.1} parent=0 // pred_check_branch
    %535 = sbr.rel (0) target = $region37
  $region36: #{nqs_forward.1} parent=0 // pred_region
    _
  $region37: #{nqs_forward.1} parent=0 // pred_fallthru
    _
  // Predicated region
  $region38: #{nqs_forward.1} parent=0 // pred_check
    _
  $region39: #{nqs_forward.1} parent=0 // pred_check_branch
    %537 = sbr.rel (0) target = $region41
  $region40: #{nqs_forward.1} parent=0 // pred_region
    _
  $region41: #{nqs_forward.1} parent=0 // pred_fallthru
    _

</llo_original>
